<compile_context>
chip_gen: v7x
topology: tpu7x:2x2x1
jax: 0.10.0
libtpu: 0.0.40
codegen_flags: <defaults>
</compile_context>

<pallas_src>
import jax
import jax.numpy as jnp
from jax.experimental import pallas as pl
from jax.experimental.pallas import tpu as pltpu


def _pos_encoder_kernel_flat(x_ref, cls_ref, pos_ref, o_ref):
    # x_ref:   (bt, N*E)      batch tile of input tokens, seq*emb on the lane axis
    # cls_ref: (1, E)         cls_token + positions[0]   (precomputed, shared)
    # pos_ref: (1, N*E)       positions[1:] flattened    (shared)
    # o_ref:   (bt, (N+1)*E)
    bt = x_ref.shape[0]
    e = cls_ref.shape[-1]
    ne = x_ref.shape[-1]
    # cls column: whole lane-tile placement at lanes [0, E).
    o_ref[:, pl.ds(0, e)] = jnp.broadcast_to(cls_ref[...], (bt, e)).astype(o_ref.dtype)
    # Hot add: pure VPU work, lane-dense store at lane offset E.
    o_ref[:, pl.ds(e, ne)] = (x_ref[...] + pos_ref[...]).astype(o_ref.dtype)


def _pos_encoder_kernel_3d(x_ref, cls_ref, pos_ref, o_ref):
    # Fallback layout: x_ref (bt, N, E), cls_ref (1, E), pos_ref (N, E),
    # o_ref (bt, N+1, E).  Used when one flattened batch row is too big.
    bt, _, e = x_ref.shape
    x_plus = x_ref[...] + pos_ref[...][None, :, :]
    cls_rows = jnp.broadcast_to(cls_ref[...][None, :, :], (bt, 1, e))
    o_ref[...] = jnp.concatenate([cls_rows, x_plus], axis=1).astype(o_ref.dtype)


def _const_spec(block_shape, *, single_buffer):
    """BlockSpec for a grid-invariant input; request single buffering if asked."""
    index_map = lambda i: (0,) * len(block_shape)
    if single_buffer:
        try:
            return pl.BlockSpec(block_shape, index_map, pipeline_mode=pl.Buffered(1))
        except TypeError:  # older BlockSpec signature without pipeline_mode
            pass
    return pl.BlockSpec(block_shape, index_map)


def position_encoder_rppg(x, cls_token, positions, *,
                          target_bytes_per_step=8 << 20,
                          vmem_budget_bytes=40 << 20,
                          min_grid_steps=2):
    """x: (B, N, E); cls_token: (1, 1, E); positions: (N+1, E) -> (B, N+1, E)."""
    B, N, E = x.shape
    assert cls_token.shape == (1, 1, E)
    assert positions.shape == (N + 1, E)
    dtype = x.dtype
    itemsize = jnp.dtype(dtype).itemsize

    # One-time prep (tiny ops, done by XLA outside the kernel): fold positions[0]
    # into the cls token and keep the rest as its own contiguous slab.
    cls_plus = (cls_token[0] + positions[0:1, :]).astype(dtype)        # (1, E)
    pos_rest = positions[1:, :].astype(dtype)                          # (N, E)

    row_x = N * E * itemsize             # one batch element of x
    row_o = (N + 1) * E * itemsize       # one batch element of the output
    per_b_traffic = row_x + row_o        # HBM bytes moved per batch element
    per_b_vmem = 2 * (row_x + row_o)     # double-buffered x + out blocks
    const_vmem = 2 * (row_x + E * itemsize)   # pos_rest + cls (conservative x2)
    single_buffer = const_vmem > (2 << 20)    # only bother when it reclaims real VMEM

    bt_traffic = max(1, int(target_bytes_per_step) // per_b_traffic)
    bt_vmem = (int(vmem_budget_bytes) - const_vmem) // per_b_vmem

    # Choose the flattened (lane-axis) path whenever a sublane-aligned batch tile
    # (multiple of 8, or the full batch) fits the VMEM budget.
    flat_ok = True
    if bt_vmem >= B:
        bt = min(B, bt_traffic, max(1, B // max(1, min_grid_steps)))
        if bt < B:
            bt = max(8, (bt // 8) * 8)        # sublane-aligned batch tile
            if bt >= B:
                bt = B
    elif bt_vmem >= 8:
        bt = (min(bt_vmem, max(8, bt_traffic)) // 8) * 8
    else:
        flat_ok = False                        # one flat batch row is too big

    flops = B * (N + 1) * E
    bytes_accessed = (B * N * E + (N + 1) * E + E + B * (N + 1) * E) * itemsize
    cost = pl.CostEstimate(flops=flops, transcendentals=0,
                           bytes_accessed=bytes_accessed)

    if flat_ok:
        x2 = x.reshape(B, N * E)                       # free view (contiguous dims)
        pos2 = pos_rest.reshape(1, N * E)              # free view
        grid = (pl.cdiv(B, bt),)
        vmem_needed = bt * per_b_vmem + const_vmem
        vmem_limit = int(min(max(vmem_needed + (2 << 20), 32 << 20), 112 << 20))
        out2 = pl.pallas_call(
            _pos_encoder_kernel_flat,
            out_shape=jax.ShapeDtypeStruct((B, (N + 1) * E), dtype),
            grid_spec=pltpu.PrefetchScalarGridSpec(
                num_scalar_prefetch=0,
                grid=grid,
                in_specs=[
                    pl.BlockSpec((bt, N * E), lambda i: (i, 0)),   # x, batch tile
                    _const_spec((1, E), single_buffer=single_buffer),
                    _const_spec((1, N * E), single_buffer=single_buffer),
                ],
                out_specs=pl.BlockSpec((bt, (N + 1) * E), lambda i: (i, 0)),
            ),
            compiler_params=pltpu.CompilerParams(
                dimension_semantics=("parallel",),
                vmem_limit_bytes=vmem_limit,
            ),
            cost_estimate=cost,
        )(x2, cls_plus, pos2)
        return out2.reshape(B, N + 1, E)               # free view

    # Fallback: keep (N, E) as the last two (full) dims so the batch tile has no
    # sublane-alignment constraint and VMEM is not wasted on sublane padding.
    bt3 = max(1, min(B, bt_traffic, max(1, bt_vmem)))
    grid = (pl.cdiv(B, bt3),)
    vmem_needed = bt3 * per_b_vmem + const_vmem
    # TODO(synk): for extreme N*E this working set can exceed v7x's 64 MiB VMEM;
    # an additional seq-tiling grid axis would be needed there.
    vmem_limit = int(min(max(vmem_needed + (2 << 20), 32 << 20), 112 << 20))
    return pl.pallas_call(
        _pos_encoder_kernel_3d,
        out_shape=jax.ShapeDtypeStruct((B, N + 1, E), dtype),
        grid_spec=pltpu.PrefetchScalarGridSpec(
            num_scalar_prefetch=0,
            grid=grid,
            in_specs=[
                pl.BlockSpec((bt3, N, E), lambda i: (i, 0, 0)),
                _const_spec((1, E), single_buffer=single_buffer),
                _const_spec((N, E), single_buffer=single_buffer),
            ],
            out_specs=pl.BlockSpec((bt3, N + 1, E), lambda i: (i, 0, 0)),
        ),
        compiler_params=pltpu.CompilerParams(
            dimension_semantics=("parallel",),
            vmem_limit_bytes=vmem_limit,
        ),
        cost_estimate=cost,
    )(x, cls_plus, pos_rest)


def num_patches(img_height, img_width, kernel_height, kernel_width, stride_h, stride_w):
    # Same formula as the PyTorch module __init__.
    return ((img_height - kernel_height + stride_h) // stride_h) * (
        (img_width - kernel_width + stride_w) // stride_w
    )


def _reference(x, cls_token, positions):
    b = x.shape[0]
    cls_b = jnp.broadcast_to(cls_token, (b, 1, cls_token.shape[-1]))
    return jnp.concatenate([cls_b, x], axis=1) + positions[None, :, :]


if __name__ == "__main__":
    # Small, module-consistent configuration:
    #   emb_size=128, img_height=10, img_width=32, kernel=(3,8), stride=(1,8)
    #   -> num_patch = 8 * 4 = 32 patches, so x has seq length 32.
    emb_size = 128
    n_patch = num_patches(img_height=10, img_width=32,
                          kernel_height=3, kernel_width=8,
                          stride_h=1, stride_w=8)

    key = jax.random.PRNGKey(0)
    k_cls, k_pos, k_x1, k_x2 = jax.random.split(key, 4)

    # Deterministic "parameters" (nn.Parameter(torch.randn(...)) equivalents).
    cls_token = jax.random.normal(k_cls, (1, 1, emb_size), dtype=jnp.float32)
    positions = jax.random.normal(k_pos, (n_patch + 1, emb_size), dtype=jnp.float32)

    # Run 1: tiny batch (single grid step, full-batch block).
    x1 = jax.random.normal(k_x1, (2, n_patch, emb_size), dtype=jnp.float32)
    out1 = jax.block_until_ready(position_encoder_rppg(x1, cls_token, positions))
    ref1 = _reference(x1, cls_token, positions)
    assert out1.shape == (2, n_patch + 1, emb_size)
    assert jnp.allclose(out1, ref1, atol=1e-6, rtol=1e-6)

    # Run 2: larger batch exercising the batch-tiled "parallel" grid (bt=8, 2 steps).
    x2 = jax.random.normal(k_x2, (16, n_patch, emb_size), dtype=jnp.float32)
    out2 = jax.block_until_ready(position_encoder_rppg(x2, cls_token, positions))
    ref2 = _reference(x2, cls_token, positions)
    assert out2.shape == (16, n_patch + 1, emb_size)
    assert jnp.allclose(out2, ref2, atol=1e-6, rtol=1e-6)

    print("KERNEL_OK")
</pallas_src>

<mosaic_0001>
module attributes {stable_mosaic.version = 11 : i64} {
  func.func @_pos_encoder_kernel_flat(%arg0: i32, %arg1: memref<2x4096xf32, #tpu.memory_space<vmem>>, %arg2: memref<1x128xf32, #tpu.memory_space<vmem>>, %arg3: memref<1x4096xf32, #tpu.memory_space<vmem>>, %arg4: memref<2x4224xf32, #tpu.memory_space<vmem>>) attributes {dimension_semantics = [#tpu.dimension_semantics<parallel>], iteration_bounds = array<i64: 1>, scalar_prefetch = 0 : i64, scratch_operands = 0 : i64, tpu.core_type = #tpu.core_type<tc>, window_params = [{transform_indices = @transform_0, window_bounds = array<i64: 2, 4096>}, {pipeline_mode = #tpu.pipeline_mode<synchronous>, transform_indices = @transform_1, window_bounds = array<i64: 1, 128>}, {pipeline_mode = #tpu.pipeline_mode<synchronous>, transform_indices = @transform_2, window_bounds = array<i64: 1, 4096>}, {transform_indices = @transform_3, window_bounds = array<i64: 2, 4224>}]} {
    %c0 = arith.constant 0 : index
    %c0_0 = arith.constant 0 : index
    %0 = vector.load %arg2[%c0, %c0_0] : memref<1x128xf32, #tpu.memory_space<vmem>>, vector<1x128xf32>
    %1 = vector.shape_cast %0 : vector<1x128xf32> to vector<1x128xf32>
    %2 = vector.broadcast %1 : vector<1x128xf32> to vector<2x128xf32>
    %c0_1 = arith.constant 0 : index
    %c0_2 = arith.constant 0 : index
    %3 = vector.load %arg4[%c0_1, %c0_2] : memref<2x4224xf32, #tpu.memory_space<vmem>>, vector<2x128xf32>
    tpu.vector_store %arg4[%c0_1, %c0_2], %2 {strides = array<i32>} : memref<2x4224xf32, #tpu.memory_space<vmem>>, vector<2x128xf32>,
    %c0_3 = arith.constant 0 : index
    %c0_4 = arith.constant 0 : index
    %4 = vector.load %arg1[%c0_3, %c0_4] : memref<2x4096xf32, #tpu.memory_space<vmem>>, vector<2x4096xf32>
    %c0_5 = arith.constant 0 : index
    %c0_6 = arith.constant 0 : index
    %5 = vector.load %arg3[%c0_5, %c0_6] : memref<1x4096xf32, #tpu.memory_space<vmem>>, vector<1x4096xf32>
    %6 = vector.broadcast %5 : vector<1x4096xf32> to vector<2x4096xf32>
    %7 = arith.addf %4, %6 : vector<2x4096xf32>
    %c0_7 = arith.constant 0 : index
    %c128 = arith.constant 128 : index
    %8 = vector.load %arg4[%c0_7, %c128] : memref<2x4224xf32, #tpu.memory_space<vmem>>, vector<2x4096xf32>
    tpu.vector_store %arg4[%c0_7, %c128], %7 {strides = array<i32>} : memref<2x4224xf32, #tpu.memory_space<vmem>>, vector<2x4096xf32>,
    return
  }
  func.func @transform_0(%arg0: i32) -> (i32, i32) {
    %c0_i32 = arith.constant 0 : i32
    %c0_i32_0 = arith.constant 0 : i32
    return %arg0, %c0_i32 : i32, i32
  }
  func.func @transform_1(%arg0: i32) -> (i32, i32) {
    %c0_i32 = arith.constant 0 : i32
    %c0_i32_0 = arith.constant 0 : i32
    %c0_i32_1 = arith.constant 0 : i32
    return %c0_i32, %c0_i32_0 : i32, i32
  }
  func.func @transform_2(%arg0: i32) -> (i32, i32) {
    %c0_i32 = arith.constant 0 : i32
    %c0_i32_0 = arith.constant 0 : i32
    %c0_i32_1 = arith.constant 0 : i32
    return %c0_i32, %c0_i32_0 : i32, i32
  }
  func.func @transform_3(%arg0: i32) -> (i32, i32) {
    %c0_i32 = arith.constant 0 : i32
    %c0_i32_0 = arith.constant 0 : i32
    return %arg0, %c0_i32 : i32, i32
  }
}

</mosaic_0001>

<llo_original>
// kernel: tpu_custom_call.1
$region0: #{tpu_custom_call.1}
  #allocation0 [shape = 'u32[]', space=smem, size = 0x4, offset = 0x4, fixed_abs, tag = 'smem constant byte address 0x4 - core index']
  #allocation1 [shape = 'u32[144,128]{1,0:T(1,128)}', space=vmem, size = 0x12000, scoped, tag = 'internal scratch']
  %s0 = inlined_call_operand.hbm [shape: f32[2,4096], index: 0, kind: input, shape index: {}]
  %s1 = inlined_call_operand.vmem [shape: f32[1,128], index: 1, kind: input, shape index: {}]
  %s2 = inlined_call_operand.hbm [shape: f32[1,4096], index: 2, kind: input, shape index: {}]
  %s3 = inlined_call_operand.hbm [shape: f32[2,4224], index: 3, kind: output, shape index: {}]
  %s4 = sld [smem:[#allocation0]]
  $region30: #{tpu_custom_call.1} parent=0
    _
  %s6 = ssub.s32 1, %s4
  %s7 = scalar_select 0, %s6, %s4
  $region1: #{tpu_custom_call.1} parent=0
    #allocation2 [shape = 'u8[32768]{0}', space=vmem, size = 0x8000, scoped, tag = 'input window, operand 0, single buffered']
    #allocation3 [shape = 's32[1]{0}', space=sflag, size = 0x4, scoped, tag = 'scoped memory for tpu_custom_call.1']
    #allocation4 [shape = 's32[1]{0}', space=sflag, size = 0x4, scoped, tag = 'scoped memory for tpu_custom_call.1']
    #allocation5 [shape = 'u8[16384]{0}', space=vmem, size = 0x4000, scoped, tag = 'input window, operand 2, single buffered']
    #allocation6 [shape = 's32[1]{0}', space=sflag, size = 0x4, scoped, tag = 'scoped memory for tpu_custom_call.1']
    #allocation7 [shape = 'u8[33792]{0}', space=vmem, size = 0x8400, scoped, tag = 'output window, operand 0, single buffered']
    %8 = vsyncpa [#allocation3], 0
    %9 = vsyncpa [#allocation6], 0
    %10 = vsyncpa [#allocation4], 0
    // Predicated region
    $region2: #{tpu_custom_call.1} parent=1 // pred_check
      _
    $region3: #{tpu_custom_call.1} parent=1 // pred_check_branch
      %12 = sbr.rel (0) target = $region5
    $region4: #{tpu_custom_call.1} parent=1 // pred_region
      %s14 = ssub.s32 1024, 1024
      %15 = vsyncadd [#allocation3], %s14
      %s17 = sshll.u32 [#allocation2], 4
      %s18 = int_to_ptr.vmem [resolvable:$true] %s17
      %20 = dma.hbm_to_vmem [thread:$0]  %s0, 1024, %s18, [#allocation3]
    $region5: #{tpu_custom_call.1} parent=1 // pred_fallthru
      _
    // Predicated region
    $region6: #{tpu_custom_call.1} parent=1 // pred_check
      _
    $region7: #{tpu_custom_call.1} parent=1 // pred_check_branch
      %22 = sbr.rel (0) target = $region9
    $region8: #{tpu_custom_call.1} parent=1 // pred_region
      _
    $region9: #{tpu_custom_call.1} parent=1 // pred_fallthru
      _
    // Predicated region
    $region10: #{tpu_custom_call.1} parent=1 // pred_check
      _
    $region11: #{tpu_custom_call.1} parent=1 // pred_check_branch
      %24 = sbr.rel (0) target = $region13
    $region12: #{tpu_custom_call.1} parent=1 // pred_region
      %s26 = ssub.s32 512, 512
      %27 = vsyncadd [#allocation6], %s26
      %s29 = sshll.u32 [#allocation5], 4
      %s30 = int_to_ptr.vmem [resolvable:$true] %s29
      %32 = dma.hbm_to_vmem [thread:$0]  %s2, 512, %s30, [#allocation6]
    $region13: #{tpu_custom_call.1} parent=1 // pred_fallthru
      _
    // Predicated region
    $region14: #{tpu_custom_call.1} parent=1 // pred_check
      _
    $region15: #{tpu_custom_call.1} parent=1 // pred_check_branch
      %34 = sbr.rel (0) target = $region17
    $region16: #{tpu_custom_call.1} parent=1 // pred_region
      %35 = dma.done [#allocation3], 1024
    $region17: #{tpu_custom_call.1} parent=1 // pred_fallthru
      _
    // Predicated region
    $region18: #{tpu_custom_call.1} parent=1 // pred_check
      _
    $region19: #{tpu_custom_call.1} parent=1 // pred_check_branch
      %37 = sbr.rel (0) target = $region21
    $region20: #{tpu_custom_call.1} parent=1 // pred_region
      %38 = dma.done [#allocation6], 512
    $region21: #{tpu_custom_call.1} parent=1 // pred_fallthru
      _
    %v39 = vld [vmem:[%s1] sm:$0x1]
    %v41 = vlaneseq
    %v42 = vshrl.u32 %v41, 7
    %v43 = vsub.s32 0, %v42
    %v44 = vrot.slane %v39, %v43
    %46 = vst [vmem:[#allocation7] sm:$0x3] %v44
    %v47 = vld [vmem:[#allocation2] sm:$0xff]
    %v48 = vld [vmem:[#allocation2 + $0x8] sm:$0xff]
    %v49 = vld [vmem:[#allocation2 + $0x10] sm:$0xff]
    %v50 = vld [vmem:[#allocation2 + $0x18] sm:$0xff]
    %v51 = vld [vmem:[#allocation2 + $0x20] sm:$0xff]
    %v52 = vld [vmem:[#allocation2 + $0x28] sm:$0xff]
    %v53 = vld [vmem:[#allocation2 + $0x30] sm:$0xff]
    %v54 = vld [vmem:[#allocation2 + $0x38] sm:$0xff]
    %v55 = vld [vmem:[#allocation5] sm:$0xff]
    %v56 = vld [vmem:[#allocation5 + $0x8] sm:$0xff]
    %v57 = vld [vmem:[#allocation5 + $0x10] sm:$0xff]
    %v58 = vld [vmem:[#allocation5 + $0x18] sm:$0xff]
    %v63 = vlaneseq
    %v64 = vshrl.u32 %v63, 7
    %v65 = vsub.s32 0, %v64
    %v66 = vrot.slane %v55, %v65
    %v67 = vlaneseq
    %v68 = vshrl.u32 %v67, 7
    %v69 = vsub.s32 1, %v68
    %v70 = vrot.slane %v55, %v69
    %v71 = vlaneseq
    %v72 = vshrl.u32 %v71, 7
    %v73 = vsub.s32 2, %v72
    %v74 = vrot.slane %v55, %v73
    %v75 = vlaneseq
    %v76 = vshrl.u32 %v75, 7
    %v77 = vsub.s32 3, %v76
    %v78 = vrot.slane %v55, %v77
    %v79 = vlaneseq
    %v80 = vshrl.u32 %v79, 7
    %v81 = vsub.s32 4, %v80
    %v82 = vrot.slane %v55, %v81
    %v83 = vlaneseq
    %v84 = vshrl.u32 %v83, 7
    %v85 = vsub.s32 5, %v84
    %v86 = vrot.slane %v55, %v85
    %v87 = vlaneseq
    %v88 = vshrl.u32 %v87, 7
    %v89 = vsub.s32 6, %v88
    %v90 = vrot.slane %v55, %v89
    %v91 = vlaneseq
    %v92 = vshrl.u32 %v91, 7
    %v93 = vsub.s32 7, %v92
    %v94 = vrot.slane %v55, %v93
    %v95 = vlaneseq
    %v96 = vshrl.u32 %v95, 7
    %v97 = vsub.s32 0, %v96
    %v98 = vrot.slane %v56, %v97
    %v99 = vlaneseq
    %v100 = vshrl.u32 %v99, 7
    %v101 = vsub.s32 1, %v100
    %v102 = vrot.slane %v56, %v101
    %v103 = vlaneseq
    %v104 = vshrl.u32 %v103, 7
    %v105 = vsub.s32 2, %v104
    %v106 = vrot.slane %v56, %v105
    %v107 = vlaneseq
    %v108 = vshrl.u32 %v107, 7
    %v109 = vsub.s32 3, %v108
    %v110 = vrot.slane %v56, %v109
    %v111 = vlaneseq
    %v112 = vshrl.u32 %v111, 7
    %v113 = vsub.s32 4, %v112
    %v114 = vrot.slane %v56, %v113
    %v115 = vlaneseq
    %v116 = vshrl.u32 %v115, 7
    %v117 = vsub.s32 5, %v116
    %v118 = vrot.slane %v56, %v117
    %v119 = vlaneseq
    %v120 = vshrl.u32 %v119, 7
    %v121 = vsub.s32 6, %v120
    %v122 = vrot.slane %v56, %v121
    %v123 = vlaneseq
    %v124 = vshrl.u32 %v123, 7
    %v125 = vsub.s32 7, %v124
    %v126 = vrot.slane %v56, %v125
    %v127 = vlaneseq
    %v128 = vshrl.u32 %v127, 7
    %v129 = vsub.s32 0, %v128
    %v130 = vrot.slane %v57, %v129
    %v131 = vlaneseq
    %v132 = vshrl.u32 %v131, 7
    %v133 = vsub.s32 1, %v132
    %v134 = vrot.slane %v57, %v133
    %v135 = vlaneseq
    %v136 = vshrl.u32 %v135, 7
    %v137 = vsub.s32 2, %v136
    %v138 = vrot.slane %v57, %v137
    %v139 = vlaneseq
    %v140 = vshrl.u32 %v139, 7
    %v141 = vsub.s32 3, %v140
    %v142 = vrot.slane %v57, %v141
    %v143 = vlaneseq
    %v144 = vshrl.u32 %v143, 7
    %v145 = vsub.s32 4, %v144
    %v146 = vrot.slane %v57, %v145
    %v147 = vlaneseq
    %v148 = vshrl.u32 %v147, 7
    %v149 = vsub.s32 5, %v148
    %v150 = vrot.slane %v57, %v149
    %v151 = vlaneseq
    %v152 = vshrl.u32 %v151, 7
    %v153 = vsub.s32 6, %v152
    %v154 = vrot.slane %v57, %v153
    %v155 = vlaneseq
    %v156 = vshrl.u32 %v155, 7
    %v157 = vsub.s32 7, %v156
    %v158 = vrot.slane %v57, %v157
    %v159 = vlaneseq
    %v160 = vshrl.u32 %v159, 7
    %v161 = vsub.s32 0, %v160
    %v162 = vrot.slane %v58, %v161
    %v163 = vlaneseq
    %v164 = vshrl.u32 %v163, 7
    %v165 = vsub.s32 1, %v164
    %v166 = vrot.slane %v58, %v165
    %v167 = vlaneseq
    %v168 = vshrl.u32 %v167, 7
    %v169 = vsub.s32 2, %v168
    %v170 = vrot.slane %v58, %v169
    %v171 = vlaneseq
    %v172 = vshrl.u32 %v171, 7
    %v173 = vsub.s32 3, %v172
    %v174 = vrot.slane %v58, %v173
    %v175 = vlaneseq
    %v176 = vshrl.u32 %v175, 7
    %v177 = vsub.s32 4, %v176
    %v178 = vrot.slane %v58, %v177
    %v179 = vlaneseq
    %v180 = vshrl.u32 %v179, 7
    %v181 = vsub.s32 5, %v180
    %v182 = vrot.slane %v58, %v181
    %v183 = vlaneseq
    %v184 = vshrl.u32 %v183, 7
    %v185 = vsub.s32 6, %v184
    %v186 = vrot.slane %v58, %v185
    %v187 = vlaneseq
    %v188 = vshrl.u32 %v187, 7
    %v189 = vsub.s32 7, %v188
    %v190 = vrot.slane %v58, %v189
    %v191 = vcombine.low %v66, %v70
    %v192 = vcombine.low %v74, %v78
    %v194 = vunpack.c.l.s4 1983009808
    %v195 = vunpack.c.0.s8 %v194
    %v196 = vlaneseq
    %v197 = vshrl.u32 %v196, 7
    %v198 = vsub.s32 %v195, %v197
    %v199 = vrot.slane %v191, %v198
    %v201 = vunpack.c.l.s4 1983009808
    %v202 = vunpack.c.0.s8 %v201
    %v203 = vlaneseq
    %v204 = vshrl.u32 %v203, 7
    %v205 = vsub.s32 %v202, %v204
    %v206 = vrot.slane %v192, %v205
    %v207 = vcombine.low %v199, %v206
    %v208 = vcombine.low %v82, %v86
    %v209 = vcombine.low %v90, %v94
    %v211 = vunpack.c.l.s4 1983009808
    %v212 = vunpack.c.0.s8 %v211
    %v213 = vlaneseq
    %v214 = vshrl.u32 %v213, 7
    %v215 = vsub.s32 %v212, %v214
    %v216 = vrot.slane %v208, %v215
    %v218 = vunpack.c.l.s4 1983009808
    %v219 = vunpack.c.0.s8 %v218
    %v220 = vlaneseq
    %v221 = vshrl.u32 %v220, 7
    %v222 = vsub.s32 %v219, %v221
    %v223 = vrot.slane %v209, %v222
    %v224 = vcombine.low %v216, %v223
    %v225 = vcombine.low %v98, %v102
    %v226 = vcombine.low %v106, %v110
    %v228 = vunpack.c.l.s4 1983009808
    %v229 = vunpack.c.0.s8 %v228
    %v230 = vlaneseq
    %v231 = vshrl.u32 %v230, 7
    %v232 = vsub.s32 %v229, %v231
    %v233 = vrot.slane %v225, %v232
    %v235 = vunpack.c.l.s4 1983009808
    %v236 = vunpack.c.0.s8 %v235
    %v237 = vlaneseq
    %v238 = vshrl.u32 %v237, 7
    %v239 = vsub.s32 %v236, %v238
    %v240 = vrot.slane %v226, %v239
    %v241 = vcombine.low %v233, %v240
    %v242 = vcombine.low %v114, %v118
    %v243 = vcombine.low %v122, %v126
    %v245 = vunpack.c.l.s4 1983009808
    %v246 = vunpack.c.0.s8 %v245
    %v247 = vlaneseq
    %v248 = vshrl.u32 %v247, 7
    %v249 = vsub.s32 %v246, %v248
    %v250 = vrot.slane %v242, %v249
    %v252 = vunpack.c.l.s4 1983009808
    %v253 = vunpack.c.0.s8 %v252
    %v254 = vlaneseq
    %v255 = vshrl.u32 %v254, 7
    %v256 = vsub.s32 %v253, %v255
    %v257 = vrot.slane %v243, %v256
    %v258 = vcombine.low %v250, %v257
    %v259 = vcombine.low %v130, %v134
    %v260 = vcombine.low %v138, %v142
    %v262 = vunpack.c.l.s4 1983009808
    %v263 = vunpack.c.0.s8 %v262
    %v264 = vlaneseq
    %v265 = vshrl.u32 %v264, 7
    %v266 = vsub.s32 %v263, %v265
    %v267 = vrot.slane %v259, %v266
    %v269 = vunpack.c.l.s4 1983009808
    %v270 = vunpack.c.0.s8 %v269
    %v271 = vlaneseq
    %v272 = vshrl.u32 %v271, 7
    %v273 = vsub.s32 %v270, %v272
    %v274 = vrot.slane %v260, %v273
    %v275 = vcombine.low %v267, %v274
    %v276 = vcombine.low %v146, %v150
    %v277 = vcombine.low %v154, %v158
    %v279 = vunpack.c.l.s4 1983009808
    %v280 = vunpack.c.0.s8 %v279
    %v281 = vlaneseq
    %v282 = vshrl.u32 %v281, 7
    %v283 = vsub.s32 %v280, %v282
    %v284 = vrot.slane %v276, %v283
    %v286 = vunpack.c.l.s4 1983009808
    %v287 = vunpack.c.0.s8 %v286
    %v288 = vlaneseq
    %v289 = vshrl.u32 %v288, 7
    %v290 = vsub.s32 %v287, %v289
    %v291 = vrot.slane %v277, %v290
    %v292 = vcombine.low %v284, %v291
    %v293 = vcombine.low %v162, %v166
    %v294 = vcombine.low %v170, %v174
    %v296 = vunpack.c.l.s4 1983009808
    %v297 = vunpack.c.0.s8 %v296
    %v298 = vlaneseq
    %v299 = vshrl.u32 %v298, 7
    %v300 = vsub.s32 %v297, %v299
    %v301 = vrot.slane %v293, %v300
    %v303 = vunpack.c.l.s4 1983009808
    %v304 = vunpack.c.0.s8 %v303
    %v305 = vlaneseq
    %v306 = vshrl.u32 %v305, 7
    %v307 = vsub.s32 %v304, %v306
    %v308 = vrot.slane %v294, %v307
    %v309 = vcombine.low %v301, %v308
    %v310 = vcombine.low %v178, %v182
    %v311 = vcombine.low %v186, %v190
    %v313 = vunpack.c.l.s4 1983009808
    %v314 = vunpack.c.0.s8 %v313
    %v315 = vlaneseq
    %v316 = vshrl.u32 %v315, 7
    %v317 = vsub.s32 %v314, %v316
    %v318 = vrot.slane %v310, %v317
    %v320 = vunpack.c.l.s4 1983009808
    %v321 = vunpack.c.0.s8 %v320
    %v322 = vlaneseq
    %v323 = vshrl.u32 %v322, 7
    %v324 = vsub.s32 %v321, %v323
    %v325 = vrot.slane %v311, %v324
    %v326 = vcombine.low %v318, %v325
    %v335 = vadd.f32 %v47, %v207
    %v336 = vadd.f32 %v48, %v224
    %v337 = vadd.f32 %v49, %v241
    %v338 = vadd.f32 %v50, %v258
    %v339 = vadd.f32 %v51, %v275
    %v340 = vadd.f32 %v52, %v292
    %v341 = vadd.f32 %v53, %v309
    %v342 = vadd.f32 %v54, %v326
    %343 = vst [vmem:[#allocation7 + $0x2] sm:$0xff] %v335
    %344 = vst [vmem:[#allocation7 + $0xa] sm:$0xff] %v336
    %345 = vst [vmem:[#allocation7 + $0x12] sm:$0xff] %v337
    %346 = vst [vmem:[#allocation7 + $0x1a] sm:$0xff] %v338
    %347 = vst [vmem:[#allocation7 + $0x22] sm:$0xff] %v339
    %348 = vst [vmem:[#allocation7 + $0x2a] sm:$0xff] %v340
    %349 = vst [vmem:[#allocation7 + $0x32] sm:$0xff] %v341
    %350 = vst [vmem:[#allocation7 + $0x3a] sm:$0xff] %v342
    // Predicated region
    $region22: #{tpu_custom_call.1} parent=1 // pred_check
      _
    $region23: #{tpu_custom_call.1} parent=1 // pred_check_branch
      %352 = sbr.rel (0) target = $region25
    $region24: #{tpu_custom_call.1} parent=1 // pred_region
      %s354 = ssub.s32 1056, 1056
      %355 = vsyncadd [#allocation4], %s354
      %s357 = sshll.u32 [#allocation7], 4
      %s358 = int_to_ptr.vmem [resolvable:$true] %s357
      %360 = dma.vmem_to_hbm [thread:$0]  %s358, 1056, %s3, [#allocation4]
    $region25: #{tpu_custom_call.1} parent=1 // pred_fallthru
      _
    // Predicated region
    $region26: #{tpu_custom_call.1} parent=1 // pred_check
      _
    $region27: #{tpu_custom_call.1} parent=1 // pred_check_branch
      %362 = sbr.rel (0) target = $region29
    $region28: #{tpu_custom_call.1} parent=1 // pred_region
      %363 = dma.done [#allocation4], 1056
    $region29: #{tpu_custom_call.1} parent=1 // pred_fallthru
      _
    %364 = vsyncpa [#allocation3], 1
    %365 = vsyncpa [#allocation6], 1
    %366 = vsyncpa [#allocation4], 1

</llo_original>
